<compile_context>
chip_gen: v5e
topology: v5e:2x2
jax: 0.10.0
libtpu: 0.0.40
codegen_flags: <defaults>
</compile_context>

<pallas_src>
import jax
import jax.numpy as jnp
from jax.experimental import pallas as pl
from jax.experimental.pallas import tpu as pltpu


def _identity_kernel(emb_ref, out_ref):
    # Pure pass-through of the embedding parameter tile (VMEM -> VMEM).
    out_ref[...] = emb_ref[...]


@jax.jit
def embedding_passthrough(embedding: jax.Array) -> jax.Array:
    """Minimal gridless Pallas identity of the embedding parameter.

    NOTE: for production use, prefer returning `embedding` directly — this
    kernel exists only to exercise the Pallas path for this module.
    """
    return pl.pallas_call(
        _identity_kernel,
        out_shape=jax.ShapeDtypeStruct(embedding.shape, embedding.dtype),
        # Gridless single-block call: full-array blocks resident in VMEM.
        in_specs=[pl.BlockSpec(memory_space=pltpu.MemorySpace.VMEM)],
        out_specs=pl.BlockSpec(memory_space=pltpu.MemorySpace.VMEM),
        # Alias output 0 onto input 0: no new HBM allocation for an identity.
        input_output_aliases={0: 0},
    )(embedding)


class EmbeddingModule:
    """JAX/Pallas port of the PyTorch EmbeddingModule."""

    def __init__(self, key: jax.Array):
        # torch.randn(1, 3) equivalent: standard-normal init, deterministic.
        self.embedding = jax.random.normal(key, (1, 3), dtype=jnp.float32)

    def forward(self):
        """
        doesn't do anything (matches the PyTorch module exactly):
        no kernel launch, no compute — parameter access is direct.
        :return: None
        """
        return None


if __name__ == "__main__":
    key = jax.random.PRNGKey(0)
    module = EmbeddingModule(key)

    # The actual forward pass is a no-op, exactly like the PyTorch module.
    assert module.forward() is None

    # Recommended fast path: direct parameter access (no kernel launch).
    direct = module.embedding

    # Demonstration Pallas kernel (gridless, aliased identity).
    out = embedding_passthrough(module.embedding)
    out = jax.block_until_ready(out)

    assert out.shape == (1, 3)
    assert out.dtype == jnp.float32
    assert jnp.allclose(out, direct)
    print("KERNEL_OK")
</pallas_src>

<mosaic_0001>
module attributes {stable_mosaic.version = 11 : i64} {
  func.func @_identity_kernel(%arg0: memref<1x3xf32, #tpu.memory_space<vmem>>, %arg1: memref<1x3xf32, #tpu.memory_space<vmem>>) attributes {dimension_semantics = [], scalar_prefetch = 0 : i64, scratch_operands = 0 : i64, tpu.core_type = #tpu.core_type<tc>} {
    %c0 = arith.constant 0 : index
    %c0_0 = arith.constant 0 : index
    %0 = vector.load %arg0[%c0, %c0_0] : memref<1x3xf32, #tpu.memory_space<vmem>>, vector<1x3xf32>
    %c0_1 = arith.constant 0 : index
    %c0_2 = arith.constant 0 : index
    %1 = vector.load %arg1[%c0_1, %c0_2] : memref<1x3xf32, #tpu.memory_space<vmem>>, vector<1x3xf32>
    tpu.vector_store %arg1[%c0_1, %c0_2], %0 {strides = array<i32>} : memref<1x3xf32, #tpu.memory_space<vmem>>, vector<1x3xf32>,
    return
  }
}

</mosaic_0001>

<llo_original>
// kernel: embedding_passthrough.1
$region0: #{embedding_passthrough.1}
  #allocation0 [shape = 'u32[]', space=smem, size = 0x4, offset = 0x4, fixed_abs, tag = 'smem constant byte address 0x4 - core index']
  #allocation1 [shape = 'u32[72,128]{1,0:T(1,128)}', space=vmem, size = 0x9000, scoped, tag = 'internal scratch']
  %s0 = inlined_call_operand.hbm [shape: f32[1,3], index: 0, kind: input, shape index: {}, may-alias: {0,1}]
  %s1 = inlined_call_operand.hbm [shape: f32[1,3], index: 1, kind: output, shape index: {}, may-alias: {0,1}]
  %s2 = sld [smem:[#allocation0]]
  $region18: #{embedding_passthrough.1} parent=0
    _
  %s4 = ssub.s32 1, %s2
  %s5 = scalar_select 0, %s4, %s2
  $region1: #{embedding_passthrough.1} parent=0
    #allocation2 [shape = 'u8[512]{0}', space=vmem, size = 0x400, scoped, tag = 'input window, operand 0, single buffered']
    #allocation3 [shape = 's32[1]{0}', space=sflag, size = 0x4, scoped, tag = 'scoped memory for embedding_passthrough.1']
    #allocation4 [shape = 's32[1]{0}', space=sflag, size = 0x4, scoped, tag = 'scoped memory for embedding_passthrough.1']
    #allocation5 [shape = 'u8[512]{0}', space=vmem, size = 0x400, scoped, tag = 'output window, operand 0, single buffered']
    %6 = vsyncpa [#allocation3], 0
    %7 = vsyncpa [#allocation4], 0
    // Predicated region
    $region2: #{embedding_passthrough.1} parent=1 // pred_check
      _
    $region3: #{embedding_passthrough.1} parent=1 // pred_check_branch
      %9 = sbr.rel (0) target = $region5
    $region4: #{embedding_passthrough.1} parent=1 // pred_region
      %11 = vsyncadd [#allocation3], 0
      %s13 = sshll.u32 %s0, 4
      %s14 = int_to_ptr.hbm [resolvable:$true] %s13
      %s15 = sshll.u32 [#allocation2], 4
      %s16 = int_to_ptr.vmem [resolvable:$true] %s15
      %18 = dma.hbm_to_vmem [thread:$0]  %s14, 16, %s16, [#allocation3]
    $region5: #{embedding_passthrough.1} parent=1 // pred_fallthru
      _
    // Predicated region
    $region6: #{embedding_passthrough.1} parent=1 // pred_check
      _
    $region7: #{embedding_passthrough.1} parent=1 // pred_check_branch
      %20 = sbr.rel (0) target = $region9
    $region8: #{embedding_passthrough.1} parent=1 // pred_region
      %22 = dma.done [#allocation3], 16
    $region9: #{embedding_passthrough.1} parent=1 // pred_fallthru
      _
    %v23 = vld [vmem:[#allocation2] sm:$0x1]
    %vm24 = vcmask 16384
    %25 = vst.msk [vmem:[#allocation5] sm:$0x1] %vm24, %v23
    // Predicated region
    $region10: #{embedding_passthrough.1} parent=1 // pred_check
      _
    $region11: #{embedding_passthrough.1} parent=1 // pred_check_branch
      %27 = sbr.rel (0) target = $region13
    $region12: #{embedding_passthrough.1} parent=1 // pred_region
      %29 = vsyncadd [#allocation4], 0
      %s31 = sshll.u32 [#allocation5], 4
      %s32 = int_to_ptr.vmem [resolvable:$true] %s31
      %s33 = sshll.u32 %s1, 4
      %s34 = int_to_ptr.hbm [resolvable:$true] %s33
      %36 = dma.vmem_to_hbm [thread:$0]  %s32, 16, %s34, [#allocation4]
    $region13: #{embedding_passthrough.1} parent=1 // pred_fallthru
      _
    // Predicated region
    $region14: #{embedding_passthrough.1} parent=1 // pred_check
      _
    $region15: #{embedding_passthrough.1} parent=1 // pred_check_branch
      %38 = sbr.rel (0) target = $region17
    $region16: #{embedding_passthrough.1} parent=1 // pred_region
      %40 = dma.done [#allocation4], 16
    $region17: #{embedding_passthrough.1} parent=1 // pred_fallthru
      _
    %41 = vsyncpa [#allocation3], 1
    %42 = vsyncpa [#allocation4], 1

</llo_original>
